<compile_context>
chip_gen: v7x
topology: tpu7x:2x2x1
jax: 0.10.0
libtpu: 0.0.40
codegen_flags: <defaults>
</compile_context>

<pallas_src>
import jax
import jax.numpy as jnp
from jax.experimental import pallas as pl
from jax.experimental.pallas import tpu as pltpu  # noqa: F401  (TPU backend)


def ensemble_kernel(x_ref, w1_ref, b1_ref, w2_ref, b2_ref, o_ref):
    """o = ((x @ W1 + b1) + (x @ W2 + b2)) / 2 for the single resident block."""
    x = x_ref[...]                                    # bf16, (B, D)
    logits1 = jnp.dot(x, w1_ref[...], preferred_element_type=jnp.float32)
    logits2 = jnp.dot(x, w2_ref[...], preferred_element_type=jnp.float32)
    # Bias add + logit averaging in f32 on the tiny (B, K) tile (no bf16 VPU ops).
    logits_e = (logits1 + logits2 + b1_ref[...] + b2_ref[...]) * 0.5
    o_ref[...] = logits_e.astype(o_ref.dtype)


def ensemble_forward(x_nchw, w1, b1, w2, b2, *, compute_dtype=jnp.bfloat16):
    """x_nchw: [B, C, H, W]. Returns averaged logits [B, K] in float32.

    In a real inference path the sub-model weights would already be stored in
    `compute_dtype` at init, making the casts below no-ops per call.
    """
    B = x_nchw.shape[0]
    D, K = w1.shape

    # Flatten NCHW -> (B, D) (matches torch x.view(B, -1) inside a linear head).
    x_flat = x_nchw.reshape(B, D).astype(compute_dtype)
    w1c = w1.astype(compute_dtype)
    w2c = w2.astype(compute_dtype)
    b1r = b1.reshape(1, K).astype(jnp.float32)
    b2r = b2.reshape(1, K).astype(jnp.float32)

    itemsize_in = jnp.dtype(compute_dtype).itemsize
    bytes_accessed = (itemsize_in * (B * D + 2 * D * K)   # x + both weights
                      + 4 * (2 * K + B * K))              # f32 biases + output
    flops = 2 * 2 * B * D * K + 4 * B * K                 # two matmuls + averaging
    cost = pl.CostEstimate(flops=flops, transcendentals=0,
                           bytes_accessed=bytes_accessed)

    # Single grid point; every operand is resident in VMEM (~90 KiB total),
    # far under the default scoped VMEM limit on v5e/v6e/v7x.
    return pl.pallas_call(
        ensemble_kernel,
        out_shape=jax.ShapeDtypeStruct((B, K), jnp.float32),
        in_specs=[
            pl.BlockSpec((B, D), lambda: (0, 0)),
            pl.BlockSpec((D, K), lambda: (0, 0)),
            pl.BlockSpec((1, K), lambda: (0, 0)),
            pl.BlockSpec((D, K), lambda: (0, 0)),
            pl.BlockSpec((1, K), lambda: (0, 0)),
        ],
        out_specs=pl.BlockSpec((B, K), lambda: (0, 0)),
        cost_estimate=cost,
    )(x_flat, w1c, b1r, w2c, b2r)


if __name__ == "__main__":
    # Small shapes consistent with an image-classifier ensemble.
    B, C, H, W = 2, 4, 16, 16
    D = C * H * W       # 1024 flattened features
    K = 10              # number of classes / logits

    key = jax.random.PRNGKey(0)
    kx, kw1, kb1, kw2, kb2 = jax.random.split(key, 5)

    x = jax.random.normal(kx, (B, C, H, W), dtype=jnp.float32)
    # TODO(synk): real model1/model2 architectures are not specified in the
    # PyTorch module; they are modeled here as linear classifier heads.
    w1 = jax.random.normal(kw1, (D, K), dtype=jnp.float32) * 0.02
    b1 = jax.random.normal(kb1, (K,), dtype=jnp.float32) * 0.1
    w2 = jax.random.normal(kw2, (D, K), dtype=jnp.float32) * 0.02
    b2 = jax.random.normal(kb2, (K,), dtype=jnp.float32) * 0.1

    logits_e = ensemble_forward(x, w1, b1, w2, b2)
    jax.block_until_ready(logits_e)
    assert logits_e.shape == (B, K)

    # Reference 1: same math & precision (bf16 operands, f32 accumulation).
    x_flat16 = x.reshape(B, D).astype(jnp.bfloat16)
    l1 = jnp.dot(x_flat16, w1.astype(jnp.bfloat16),
                 preferred_element_type=jnp.float32) + b1
    l2 = jnp.dot(x_flat16, w2.astype(jnp.bfloat16),
                 preferred_element_type=jnp.float32) + b2
    ref_bf16 = (l1 + l2) / 2.0
    assert jnp.allclose(logits_e, ref_bf16, atol=1e-3, rtol=1e-3)

    # Reference 2: full f32 math (looser tolerance only for the bf16 operand cast).
    x_flat32 = x.reshape(B, D)
    ref_f32 = ((x_flat32 @ w1 + b1) + (x_flat32 @ w2 + b2)) / 2.0
    assert jnp.allclose(logits_e, ref_f32, atol=5e-2, rtol=5e-2)

    print("KERNEL_OK")
</pallas_src>

<mosaic_0001>
module attributes {stable_mosaic.version = 11 : i64} {
  func.func @ensemble_kernel(%arg0: memref<2x1024xbf16, #tpu.memory_space<vmem>>, %arg1: memref<1024x10xbf16, #tpu.memory_space<vmem>>, %arg2: memref<1x10xf32, #tpu.memory_space<vmem>>, %arg3: memref<1024x10xbf16, #tpu.memory_space<vmem>>, %arg4: memref<1x10xf32, #tpu.memory_space<vmem>>, %arg5: memref<2x10xf32, #tpu.memory_space<vmem>>) attributes {dimension_semantics = [], scalar_prefetch = 0 : i64, scratch_operands = 0 : i64, tpu.core_type = #tpu.core_type<tc>} {
    %c0 = arith.constant 0 : index
    %c0_0 = arith.constant 0 : index
    %0 = vector.load %arg0[%c0, %c0_0] : memref<2x1024xbf16, #tpu.memory_space<vmem>>, vector<2x1024xbf16>
    %c0_1 = arith.constant 0 : index
    %c0_2 = arith.constant 0 : index
    %1 = vector.load %arg1[%c0_1, %c0_2] : memref<1024x10xbf16, #tpu.memory_space<vmem>>, vector<1024x10xbf16>
    %cst = arith.constant dense<0.000000e+00> : vector<2x10xf32>
    %2 = tpu.matmul %0, %1, %cst {dimension_numbers = #tpu.dot_dimension_numbers<[1], [0], [0], [1], [0, 0, 1, 1], [], []>} : vector<2x1024xbf16>, vector<1024x10xbf16>, vector<2x10xf32> -> vector<2x10xf32>
    %c0_3 = arith.constant 0 : index
    %c0_4 = arith.constant 0 : index
    %3 = vector.load %arg3[%c0_3, %c0_4] : memref<1024x10xbf16, #tpu.memory_space<vmem>>, vector<1024x10xbf16>
    %cst_5 = arith.constant dense<0.000000e+00> : vector<2x10xf32>
    %4 = tpu.matmul %0, %3, %cst_5 {dimension_numbers = #tpu.dot_dimension_numbers<[1], [0], [0], [1], [0, 0, 1, 1], [], []>} : vector<2x1024xbf16>, vector<1024x10xbf16>, vector<2x10xf32> -> vector<2x10xf32>
    %5 = arith.addf %2, %4 : vector<2x10xf32>
    %c0_6 = arith.constant 0 : index
    %c0_7 = arith.constant 0 : index
    %6 = vector.load %arg2[%c0_6, %c0_7] : memref<1x10xf32, #tpu.memory_space<vmem>>, vector<1x10xf32>
    %7 = vector.broadcast %6 : vector<1x10xf32> to vector<2x10xf32>
    %8 = arith.addf %5, %7 : vector<2x10xf32>
    %c0_8 = arith.constant 0 : index
    %c0_9 = arith.constant 0 : index
    %9 = vector.load %arg4[%c0_8, %c0_9] : memref<1x10xf32, #tpu.memory_space<vmem>>, vector<1x10xf32>
    %10 = vector.broadcast %9 : vector<1x10xf32> to vector<2x10xf32>
    %11 = arith.addf %8, %10 : vector<2x10xf32>
    %cst_10 = arith.constant 5.000000e-01 : f32
    %12 = vector.broadcast %cst_10 : f32 to vector<2x10xf32>
    %13 = arith.mulf %11, %12 : vector<2x10xf32>
    %c0_11 = arith.constant 0 : index
    %c0_12 = arith.constant 0 : index
    %14 = vector.load %arg5[%c0_11, %c0_12] : memref<2x10xf32, #tpu.memory_space<vmem>>, vector<2x10xf32>
    tpu.vector_store %arg5[%c0_11, %c0_12], %13 {strides = array<i32>} : memref<2x10xf32, #tpu.memory_space<vmem>>, vector<2x10xf32>,
    return
  }
}

</mosaic_0001>

<llo_original>
// kernel: tpu_custom_call.1
$region0: #{tpu_custom_call.1}
  #allocation0 [shape = 'u32[]', space=smem, size = 0x4, offset = 0x4, fixed_abs, tag = 'smem constant byte address 0x4 - core index']
  #allocation1 [shape = 'u32[144,128]{1,0:T(1,128)}', space=vmem, size = 0x12000, scoped, tag = 'internal scratch']
  %s0 = inlined_call_operand.vmem [shape: bf16[2,1024], index: 0, kind: input, shape index: {}]
  %s1 = inlined_call_operand.vmem [shape: bf16[1024,10], index: 1, kind: input, shape index: {}]
  %s2 = inlined_call_operand.vmem [shape: f32[1,10], index: 2, kind: input, shape index: {}]
  %s3 = inlined_call_operand.vmem [shape: bf16[1024,10], index: 3, kind: input, shape index: {}]
  %s4 = inlined_call_operand.vmem [shape: f32[1,10], index: 4, kind: input, shape index: {}]
  %s5 = inlined_call_operand.hbm [shape: f32[2,10], index: 5, kind: output, shape index: {}]
  %s6 = sld [smem:[#allocation0]]
  $region30: #{tpu_custom_call.1} parent=0
    _
  %s8 = ssub.s32 1, %s6
  %s9 = scalar_select 0, %s8, %s6
  $region1: #{tpu_custom_call.1} parent=0
    #allocation2 [shape = 'u8[1024]{0}', space=vmem, size = 0x400, scoped, tag = 'output window, operand 0, single buffered']
    #allocation3 [shape = 's32[1]{0}', space=sflag, size = 0x4, scoped, tag = 'scoped memory for tpu_custom_call.1']
    %10 = vsyncpa [#allocation3], 0
    // Predicated region
    $region2: #{tpu_custom_call.1} parent=1 // pred_check
      _
    $region3: #{tpu_custom_call.1} parent=1 // pred_check_branch
      %12 = sbr.rel (0) target = $region5
    $region4: #{tpu_custom_call.1} parent=1 // pred_region
      _
    $region5: #{tpu_custom_call.1} parent=1 // pred_fallthru
      _
    // Predicated region
    $region6: #{tpu_custom_call.1} parent=1 // pred_check
      _
    $region7: #{tpu_custom_call.1} parent=1 // pred_check_branch
      %14 = sbr.rel (0) target = $region9
    $region8: #{tpu_custom_call.1} parent=1 // pred_region
      _
    $region9: #{tpu_custom_call.1} parent=1 // pred_fallthru
      _
    // Predicated region
    $region10: #{tpu_custom_call.1} parent=1 // pred_check
      _
    $region11: #{tpu_custom_call.1} parent=1 // pred_check_branch
      %16 = sbr.rel (0) target = $region13
    $region12: #{tpu_custom_call.1} parent=1 // pred_region
      _
    $region13: #{tpu_custom_call.1} parent=1 // pred_fallthru
      _
    // Predicated region
    $region14: #{tpu_custom_call.1} parent=1 // pred_check
      _
    $region15: #{tpu_custom_call.1} parent=1 // pred_check_branch
      %18 = sbr.rel (0) target = $region17
    $region16: #{tpu_custom_call.1} parent=1 // pred_region
      _
    $region17: #{tpu_custom_call.1} parent=1 // pred_fallthru
      _
    // Predicated region
    $region18: #{tpu_custom_call.1} parent=1 // pred_check
      _
    $region19: #{tpu_custom_call.1} parent=1 // pred_check_branch
      %20 = sbr.rel (0) target = $region21
    $region20: #{tpu_custom_call.1} parent=1 // pred_region
      _
    $region21: #{tpu_custom_call.1} parent=1 // pred_fallthru
      _
    %v22 = vld [vmem:[%s0] sm:$0xff]
    %v23 = vld [vmem:[%s1] sm:$0xf]
    %v24 = vld [vmem:[%s1 + $0x4] sm:$0xf]
    %v25 = vld [vmem:[%s1 + $0x8] sm:$0xf]
    %v26 = vld [vmem:[%s1 + $0xc] sm:$0xf]
    %v27 = vld [vmem:[%s1 + $0x10] sm:$0xf]
    %v28 = vld [vmem:[%s1 + $0x14] sm:$0xf]
    %v29 = vld [vmem:[%s1 + $0x18] sm:$0xf]
    %v30 = vld [vmem:[%s1 + $0x1c] sm:$0xf]
    %v31 = vld [vmem:[%s1 + $0x20] sm:$0xf]
    %v32 = vld [vmem:[%s1 + $0x24] sm:$0xf]
    %v33 = vld [vmem:[%s1 + $0x28] sm:$0xf]
    %v34 = vld [vmem:[%s1 + $0x2c] sm:$0xf]
    %v35 = vld [vmem:[%s1 + $0x30] sm:$0xf]
    %v36 = vld [vmem:[%s1 + $0x34] sm:$0xf]
    %v37 = vld [vmem:[%s1 + $0x38] sm:$0xf]
    %v38 = vld [vmem:[%s1 + $0x3c] sm:$0xf]
    %v39 = vld [vmem:[%s1 + $0x40] sm:$0xf]
    %v40 = vld [vmem:[%s1 + $0x44] sm:$0xf]
    %v41 = vld [vmem:[%s1 + $0x48] sm:$0xf]
    %v42 = vld [vmem:[%s1 + $0x4c] sm:$0xf]
    %v43 = vld [vmem:[%s1 + $0x50] sm:$0xf]
    %v44 = vld [vmem:[%s1 + $0x54] sm:$0xf]
    %v45 = vld [vmem:[%s1 + $0x58] sm:$0xf]
    %v46 = vld [vmem:[%s1 + $0x5c] sm:$0xf]
    %v47 = vld [vmem:[%s1 + $0x60] sm:$0xf]
    %v48 = vld [vmem:[%s1 + $0x64] sm:$0xf]
    %v49 = vld [vmem:[%s1 + $0x68] sm:$0xf]
    %v50 = vld [vmem:[%s1 + $0x6c] sm:$0xf]
    %v51 = vld [vmem:[%s1 + $0x70] sm:$0xf]
    %v52 = vld [vmem:[%s1 + $0x74] sm:$0xf]
    %v53 = vld [vmem:[%s1 + $0x78] sm:$0xf]
    %v54 = vld [vmem:[%s1 + $0x7c] sm:$0xf]
    %v55 = vld [vmem:[%s1 + $0x80] sm:$0xf]
    %v56 = vld [vmem:[%s1 + $0x84] sm:$0xf]
    %v57 = vld [vmem:[%s1 + $0x88] sm:$0xf]
    %v58 = vld [vmem:[%s1 + $0x8c] sm:$0xf]
    %v59 = vld [vmem:[%s1 + $0x90] sm:$0xf]
    %v60 = vld [vmem:[%s1 + $0x94] sm:$0xf]
    %v61 = vld [vmem:[%s1 + $0x98] sm:$0xf]
    %v62 = vld [vmem:[%s1 + $0x9c] sm:$0xf]
    %v63 = vld [vmem:[%s1 + $0xa0] sm:$0xf]
    %v64 = vld [vmem:[%s1 + $0xa4] sm:$0xf]
    %v65 = vld [vmem:[%s1 + $0xa8] sm:$0xf]
    %v66 = vld [vmem:[%s1 + $0xac] sm:$0xf]
    %v67 = vld [vmem:[%s1 + $0xb0] sm:$0xf]
    %v68 = vld [vmem:[%s1 + $0xb4] sm:$0xf]
    %v69 = vld [vmem:[%s1 + $0xb8] sm:$0xf]
    %v70 = vld [vmem:[%s1 + $0xbc] sm:$0xf]
    %v71 = vld [vmem:[%s1 + $0xc0] sm:$0xf]
    %v72 = vld [vmem:[%s1 + $0xc4] sm:$0xf]
    %v73 = vld [vmem:[%s1 + $0xc8] sm:$0xf]
    %v74 = vld [vmem:[%s1 + $0xcc] sm:$0xf]
    %v75 = vld [vmem:[%s1 + $0xd0] sm:$0xf]
    %v76 = vld [vmem:[%s1 + $0xd4] sm:$0xf]
    %v77 = vld [vmem:[%s1 + $0xd8] sm:$0xf]
    %v78 = vld [vmem:[%s1 + $0xdc] sm:$0xf]
    %v79 = vld [vmem:[%s1 + $0xe0] sm:$0xf]
    %v80 = vld [vmem:[%s1 + $0xe4] sm:$0xf]
    %v81 = vld [vmem:[%s1 + $0xe8] sm:$0xf]
    %v82 = vld [vmem:[%s1 + $0xec] sm:$0xf]
    %v83 = vld [vmem:[%s1 + $0xf0] sm:$0xf]
    %v84 = vld [vmem:[%s1 + $0xf4] sm:$0xf]
    %v85 = vld [vmem:[%s1 + $0xf8] sm:$0xf]
    %v86 = vld [vmem:[%s1 + $0xfc] sm:$0xf]
    %v87 = vld [vmem:[%s1 + $0x100] sm:$0xf]
    %v88 = vld [vmem:[%s1 + $0x104] sm:$0xf]
    %v89 = vld [vmem:[%s1 + $0x108] sm:$0xf]
    %v90 = vld [vmem:[%s1 + $0x10c] sm:$0xf]
    %v91 = vld [vmem:[%s1 + $0x110] sm:$0xf]
    %v92 = vld [vmem:[%s1 + $0x114] sm:$0xf]
    %v93 = vld [vmem:[%s1 + $0x118] sm:$0xf]
    %v94 = vld [vmem:[%s1 + $0x11c] sm:$0xf]
    %v95 = vld [vmem:[%s1 + $0x120] sm:$0xf]
    %v96 = vld [vmem:[%s1 + $0x124] sm:$0xf]
    %v97 = vld [vmem:[%s1 + $0x128] sm:$0xf]
    %v98 = vld [vmem:[%s1 + $0x12c] sm:$0xf]
    %v99 = vld [vmem:[%s1 + $0x130] sm:$0xf]
    %v100 = vld [vmem:[%s1 + $0x134] sm:$0xf]
    %v101 = vld [vmem:[%s1 + $0x138] sm:$0xf]
    %v102 = vld [vmem:[%s1 + $0x13c] sm:$0xf]
    %v103 = vld [vmem:[%s1 + $0x140] sm:$0xf]
    %v104 = vld [vmem:[%s1 + $0x144] sm:$0xf]
    %v105 = vld [vmem:[%s1 + $0x148] sm:$0xf]
    %v106 = vld [vmem:[%s1 + $0x14c] sm:$0xf]
    %v107 = vld [vmem:[%s1 + $0x150] sm:$0xf]
    %v108 = vld [vmem:[%s1 + $0x154] sm:$0xf]
    %v109 = vld [vmem:[%s1 + $0x158] sm:$0xf]
    %v110 = vld [vmem:[%s1 + $0x15c] sm:$0xf]
    %v111 = vld [vmem:[%s1 + $0x160] sm:$0xf]
    %v112 = vld [vmem:[%s1 + $0x164] sm:$0xf]
    %v113 = vld [vmem:[%s1 + $0x168] sm:$0xf]
    %v114 = vld [vmem:[%s1 + $0x16c] sm:$0xf]
    %v115 = vld [vmem:[%s1 + $0x170] sm:$0xf]
    %v116 = vld [vmem:[%s1 + $0x174] sm:$0xf]
    %v117 = vld [vmem:[%s1 + $0x178] sm:$0xf]
    %v118 = vld [vmem:[%s1 + $0x17c] sm:$0xf]
    %v119 = vld [vmem:[%s1 + $0x180] sm:$0xf]
    %v120 = vld [vmem:[%s1 + $0x184] sm:$0xf]
    %v121 = vld [vmem:[%s1 + $0x188] sm:$0xf]
    %v122 = vld [vmem:[%s1 + $0x18c] sm:$0xf]
    %v123 = vld [vmem:[%s1 + $0x190] sm:$0xf]
    %v124 = vld [vmem:[%s1 + $0x194] sm:$0xf]
    %v125 = vld [vmem:[%s1 + $0x198] sm:$0xf]
    %v126 = vld [vmem:[%s1 + $0x19c] sm:$0xf]
    %v127 = vld [vmem:[%s1 + $0x1a0] sm:$0xf]
    %v128 = vld [vmem:[%s1 + $0x1a4] sm:$0xf]
    %v129 = vld [vmem:[%s1 + $0x1a8] sm:$0xf]
    %v130 = vld [vmem:[%s1 + $0x1ac] sm:$0xf]
    %v131 = vld [vmem:[%s1 + $0x1b0] sm:$0xf]
    %v132 = vld [vmem:[%s1 + $0x1b4] sm:$0xf]
    %v133 = vld [vmem:[%s1 + $0x1b8] sm:$0xf]
    %v134 = vld [vmem:[%s1 + $0x1bc] sm:$0xf]
    %v135 = vld [vmem:[%s1 + $0x1c0] sm:$0xf]
    %v136 = vld [vmem:[%s1 + $0x1c4] sm:$0xf]
    %v137 = vld [vmem:[%s1 + $0x1c8] sm:$0xf]
    %v138 = vld [vmem:[%s1 + $0x1cc] sm:$0xf]
    %v139 = vld [vmem:[%s1 + $0x1d0] sm:$0xf]
    %v140 = vld [vmem:[%s1 + $0x1d4] sm:$0xf]
    %v141 = vld [vmem:[%s1 + $0x1d8] sm:$0xf]
    %v142 = vld [vmem:[%s1 + $0x1dc] sm:$0xf]
    %v143 = vld [vmem:[%s1 + $0x1e0] sm:$0xf]
    %v144 = vld [vmem:[%s1 + $0x1e4] sm:$0xf]
    %v145 = vld [vmem:[%s1 + $0x1e8] sm:$0xf]
    %v146 = vld [vmem:[%s1 + $0x1ec] sm:$0xf]
    %v147 = vld [vmem:[%s1 + $0x1f0] sm:$0xf]
    %v148 = vld [vmem:[%s1 + $0x1f4] sm:$0xf]
    %v149 = vld [vmem:[%s1 + $0x1f8] sm:$0xf]
    %v150 = vld [vmem:[%s1 + $0x1fc] sm:$0xf]
    %v151 = vld [vmem:[%s3] sm:$0xf]
    %v152 = vld [vmem:[%s3 + $0x4] sm:$0xf]
    %v153 = vld [vmem:[%s3 + $0x8] sm:$0xf]
    %v154 = vld [vmem:[%s3 + $0xc] sm:$0xf]
    %v155 = vld [vmem:[%s3 + $0x10] sm:$0xf]
    %v156 = vld [vmem:[%s3 + $0x14] sm:$0xf]
    %v157 = vld [vmem:[%s3 + $0x18] sm:$0xf]
    %v158 = vld [vmem:[%s3 + $0x1c] sm:$0xf]
    %v159 = vld [vmem:[%s3 + $0x20] sm:$0xf]
    %v160 = vld [vmem:[%s3 + $0x24] sm:$0xf]
    %v161 = vld [vmem:[%s3 + $0x28] sm:$0xf]
    %v162 = vld [vmem:[%s3 + $0x2c] sm:$0xf]
    %v163 = vld [vmem:[%s3 + $0x30] sm:$0xf]
    %v164 = vld [vmem:[%s3 + $0x34] sm:$0xf]
    %v165 = vld [vmem:[%s3 + $0x38] sm:$0xf]
    %v166 = vld [vmem:[%s3 + $0x3c] sm:$0xf]
    %v167 = vld [vmem:[%s3 + $0x40] sm:$0xf]
    %v168 = vld [vmem:[%s3 + $0x44] sm:$0xf]
    %v169 = vld [vmem:[%s3 + $0x48] sm:$0xf]
    %v170 = vld [vmem:[%s3 + $0x4c] sm:$0xf]
    %v171 = vld [vmem:[%s3 + $0x50] sm:$0xf]
    %v172 = vld [vmem:[%s3 + $0x54] sm:$0xf]
    %v173 = vld [vmem:[%s3 + $0x58] sm:$0xf]
    %v174 = vld [vmem:[%s3 + $0x5c] sm:$0xf]
    %v175 = vld [vmem:[%s3 + $0x60] sm:$0xf]
    %v176 = vld [vmem:[%s3 + $0x64] sm:$0xf]
    %v177 = vld [vmem:[%s3 + $0x68] sm:$0xf]
    %v178 = vld [vmem:[%s3 + $0x6c] sm:$0xf]
    %v179 = vld [vmem:[%s3 + $0x70] sm:$0xf]
    %v180 = vld [vmem:[%s3 + $0x74] sm:$0xf]
    %v181 = vld [vmem:[%s3 + $0x78] sm:$0xf]
    %v182 = vld [vmem:[%s3 + $0x7c] sm:$0xf]
    %v183 = vld [vmem:[%s3 + $0x80] sm:$0xf]
    %v184 = vld [vmem:[%s3 + $0x84] sm:$0xf]
    %v185 = vld [vmem:[%s3 + $0x88] sm:$0xf]
    %v186 = vld [vmem:[%s3 + $0x8c] sm:$0xf]
    %v187 = vld [vmem:[%s3 + $0x90] sm:$0xf]
    %v188 = vld [vmem:[%s3 + $0x94] sm:$0xf]
    %v189 = vld [vmem:[%s3 + $0x98] sm:$0xf]
    %v190 = vld [vmem:[%s3 + $0x9c] sm:$0xf]
    %v191 = vld [vmem:[%s3 + $0xa0] sm:$0xf]
    %v192 = vld [vmem:[%s3 + $0xa4] sm:$0xf]
    %v193 = vld [vmem:[%s3 + $0xa8] sm:$0xf]
    %v194 = vld [vmem:[%s3 + $0xac] sm:$0xf]
    %v195 = vld [vmem:[%s3 + $0xb0] sm:$0xf]
    %v196 = vld [vmem:[%s3 + $0xb4] sm:$0xf]
    %v197 = vld [vmem:[%s3 + $0xb8] sm:$0xf]
    %v198 = vld [vmem:[%s3 + $0xbc] sm:$0xf]
    %v199 = vld [vmem:[%s3 + $0xc0] sm:$0xf]
    %v200 = vld [vmem:[%s3 + $0xc4] sm:$0xf]
    %v201 = vld [vmem:[%s3 + $0xc8] sm:$0xf]
    %v202 = vld [vmem:[%s3 + $0xcc] sm:$0xf]
    %v203 = vld [vmem:[%s3 + $0xd0] sm:$0xf]
    %v204 = vld [vmem:[%s3 + $0xd4] sm:$0xf]
    %v205 = vld [vmem:[%s3 + $0xd8] sm:$0xf]
    %v206 = vld [vmem:[%s3 + $0xdc] sm:$0xf]
    %v207 = vld [vmem:[%s3 + $0xe0] sm:$0xf]
    %v208 = vld [vmem:[%s3 + $0xe4] sm:$0xf]
    %v209 = vld [vmem:[%s3 + $0xe8] sm:$0xf]
    %v210 = vld [vmem:[%s3 + $0xec] sm:$0xf]
    %v211 = vld [vmem:[%s3 + $0xf0] sm:$0xf]
    %v212 = vld [vmem:[%s3 + $0xf4] sm:$0xf]
    %v213 = vld [vmem:[%s3 + $0xf8] sm:$0xf]
    %v214 = vld [vmem:[%s3 + $0xfc] sm:$0xf]
    %v215 = vld [vmem:[%s3 + $0x100] sm:$0xf]
    %v216 = vld [vmem:[%s3 + $0x104] sm:$0xf]
    %v217 = vld [vmem:[%s3 + $0x108] sm:$0xf]
    %v218 = vld [vmem:[%s3 + $0x10c] sm:$0xf]
    %v219 = vld [vmem:[%s3 + $0x110] sm:$0xf]
    %v220 = vld [vmem:[%s3 + $0x114] sm:$0xf]
    %v221 = vld [vmem:[%s3 + $0x118] sm:$0xf]
    %v222 = vld [vmem:[%s3 + $0x11c] sm:$0xf]
    %v223 = vld [vmem:[%s3 + $0x120] sm:$0xf]
    %v224 = vld [vmem:[%s3 + $0x124] sm:$0xf]
    %v225 = vld [vmem:[%s3 + $0x128] sm:$0xf]
    %v226 = vld [vmem:[%s3 + $0x12c] sm:$0xf]
    %v227 = vld [vmem:[%s3 + $0x130] sm:$0xf]
    %v228 = vld [vmem:[%s3 + $0x134] sm:$0xf]
    %v229 = vld [vmem:[%s3 + $0x138] sm:$0xf]
    %v230 = vld [vmem:[%s3 + $0x13c] sm:$0xf]
    %v231 = vld [vmem:[%s3 + $0x140] sm:$0xf]
    %v232 = vld [vmem:[%s3 + $0x144] sm:$0xf]
    %v233 = vld [vmem:[%s3 + $0x148] sm:$0xf]
    %v234 = vld [vmem:[%s3 + $0x14c] sm:$0xf]
    %v235 = vld [vmem:[%s3 + $0x150] sm:$0xf]
    %v236 = vld [vmem:[%s3 + $0x154] sm:$0xf]
    %v237 = vld [vmem:[%s3 + $0x158] sm:$0xf]
    %v238 = vld [vmem:[%s3 + $0x15c] sm:$0xf]
    %v239 = vld [vmem:[%s3 + $0x160] sm:$0xf]
    %v240 = vld [vmem:[%s3 + $0x164] sm:$0xf]
    %v241 = vld [vmem:[%s3 + $0x168] sm:$0xf]
    %v242 = vld [vmem:[%s3 + $0x16c] sm:$0xf]
    %v243 = vld [vmem:[%s3 + $0x170] sm:$0xf]
    %v244 = vld [vmem:[%s3 + $0x174] sm:$0xf]
    %v245 = vld [vmem:[%s3 + $0x178] sm:$0xf]
    %v246 = vld [vmem:[%s3 + $0x17c] sm:$0xf]
    %v247 = vld [vmem:[%s3 + $0x180] sm:$0xf]
    %v248 = vld [vmem:[%s3 + $0x184] sm:$0xf]
    %v249 = vld [vmem:[%s3 + $0x188] sm:$0xf]
    %v250 = vld [vmem:[%s3 + $0x18c] sm:$0xf]
    %v251 = vld [vmem:[%s3 + $0x190] sm:$0xf]
    %v252 = vld [vmem:[%s3 + $0x194] sm:$0xf]
    %v253 = vld [vmem:[%s3 + $0x198] sm:$0xf]
    %v254 = vld [vmem:[%s3 + $0x19c] sm:$0xf]
    %v255 = vld [vmem:[%s3 + $0x1a0] sm:$0xf]
    %v256 = vld [vmem:[%s3 + $0x1a4] sm:$0xf]
    %v257 = vld [vmem:[%s3 + $0x1a8] sm:$0xf]
    %v258 = vld [vmem:[%s3 + $0x1ac] sm:$0xf]
    %v259 = vld [vmem:[%s3 + $0x1b0] sm:$0xf]
    %v260 = vld [vmem:[%s3 + $0x1b4] sm:$0xf]
    %v261 = vld [vmem:[%s3 + $0x1b8] sm:$0xf]
    %v262 = vld [vmem:[%s3 + $0x1bc] sm:$0xf]
    %v263 = vld [vmem:[%s3 + $0x1c0] sm:$0xf]
    %v264 = vld [vmem:[%s3 + $0x1c4] sm:$0xf]
    %v265 = vld [vmem:[%s3 + $0x1c8] sm:$0xf]
    %v266 = vld [vmem:[%s3 + $0x1cc] sm:$0xf]
    %v267 = vld [vmem:[%s3 + $0x1d0] sm:$0xf]
    %v268 = vld [vmem:[%s3 + $0x1d4] sm:$0xf]
    %v269 = vld [vmem:[%s3 + $0x1d8] sm:$0xf]
    %v270 = vld [vmem:[%s3 + $0x1dc] sm:$0xf]
    %v271 = vld [vmem:[%s3 + $0x1e0] sm:$0xf]
    %v272 = vld [vmem:[%s3 + $0x1e4] sm:$0xf]
    %v273 = vld [vmem:[%s3 + $0x1e8] sm:$0xf]
    %v274 = vld [vmem:[%s3 + $0x1ec] sm:$0xf]
    %v275 = vld [vmem:[%s3 + $0x1f0] sm:$0xf]
    %v276 = vld [vmem:[%s3 + $0x1f4] sm:$0xf]
    %v277 = vld [vmem:[%s3 + $0x1f8] sm:$0xf]
    %v278 = vld [vmem:[%s3 + $0x1fc] sm:$0xf]
    %v280 = vcombine.high %v22, %v22
    %v282 = vunpack.c.l.s4 1966171168
    %v283 = vunpack.c.0.s8 %v282
    %v284 = vlaneseq
    %v285 = vshrl.u32 %v284, 7
    %v286 = vsub.s32 %v283, %v285
    %v287 = vrot.slane %v22, %v286
    %v289 = vunpack.c.l.s4 1966171168
    %v290 = vunpack.c.0.s8 %v289
    %v291 = vlaneseq
    %v292 = vshrl.u32 %v291, 7
    %v293 = vsub.s32 %v290, %v292
    %v294 = vrot.slane %v280, %v293
    %v295 = vcombine.high %v287, %v287
    %v296 = vcombine.high %v294, %v294
    %v298 = vunpack.c.l.s4 1966171168
    %v299 = vunpack.c.0.s8 %v298
    %v300 = vlaneseq
    %v301 = vshrl.u32 %v300, 7
    %v302 = vsub.s32 %v299, %v301
    %v303 = vrot.slane %v287, %v302
    %v305 = vunpack.c.l.s4 1966171168
    %v306 = vunpack.c.0.s8 %v305
    %v307 = vlaneseq
    %v308 = vshrl.u32 %v307, 7
    %v309 = vsub.s32 %v306, %v308
    %v310 = vrot.slane %v294, %v309
    %v312 = vunpack.c.l.s4 1966171168
    %v313 = vunpack.c.0.s8 %v312
    %v314 = vlaneseq
    %v315 = vshrl.u32 %v314, 7
    %v316 = vsub.s32 %v313, %v315
    %v317 = vrot.slane %v295, %v316
    %v319 = vunpack.c.l.s4 1966171168
    %v320 = vunpack.c.0.s8 %v319
    %v321 = vlaneseq
    %v322 = vshrl.u32 %v321, 7
    %v323 = vsub.s32 %v320, %v322
    %v324 = vrot.slane %v296, %v323
    %v325 = vcombine.high %v303, %v303
    %v326 = vcombine.high %v310, %v310
    %v327 = vcombine.high %v317, %v317
    %v328 = vcombine.high %v324, %v324
    %v465 = vunpack.c.l.b16 %v151
    %v466 = vunpack.c.l.b16 %v152
    %v467 = vunpack.c.l.b16 %v153
    %v468 = vunpack.c.l.b16 %v154
    %v469 = vunpack.c.l.b16 %v155
    %v470 = vunpack.c.l.b16 %v156
    %v471 = vunpack.c.l.b16 %v157
    %v472 = vunpack.c.l.b16 %v158
    %v473 = vunpack.c.l.b16 %v159
    %v474 = vunpack.c.l.b16 %v160
    %v475 = vunpack.c.l.b16 %v161
    %v476 = vunpack.c.l.b16 %v162
    %v477 = vunpack.c.l.b16 %v163
    %v478 = vunpack.c.l.b16 %v164
    %v479 = vunpack.c.l.b16 %v165
    %v480 = vunpack.c.l.b16 %v166
    %v481 = vunpack.c.l.b16 %v167
    %v482 = vunpack.c.l.b16 %v168
    %v483 = vunpack.c.l.b16 %v169
    %v484 = vunpack.c.l.b16 %v170
    %v485 = vunpack.c.l.b16 %v171
    %v486 = vunpack.c.l.b16 %v172
    %v487 = vunpack.c.l.b16 %v173
    %v488 = vunpack.c.l.b16 %v174
    %v489 = vunpack.c.l.b16 %v175
    %v490 = vunpack.c.l.b16 %v176
    %v491 = vunpack.c.l.b16 %v177
    %v492 = vunpack.c.l.b16 %v178
    %v493 = vunpack.c.l.b16 %v179
    %v494 = vunpack.c.l.b16 %v180
    %v495 = vunpack.c.l.b16 %v181
    %v496 = vunpack.c.l.b16 %v182
    %v497 = vunpack.c.l.b16 %v183
    %v498 = vunpack.c.l.b16 %v184
    %v499 = vunpack.c.l.b16 %v185
    %v500 = vunpack.c.l.b16 %v186
    %v501 = vunpack.c.l.b16 %v187
    %v502 = vunpack.c.l.b16 %v188
    %v503 = vunpack.c.l.b16 %v189
    %v504 = vunpack.c.l.b16 %v190
    %v505 = vunpack.c.l.b16 %v191
    %v506 = vunpack.c.l.b16 %v192
    %v507 = vunpack.c.l.b16 %v193
    %v508 = vunpack.c.l.b16 %v194
    %v509 = vunpack.c.l.b16 %v195
    %v510 = vunpack.c.l.b16 %v196
    %v511 = vunpack.c.l.b16 %v197
    %v512 = vunpack.c.l.b16 %v198
    %v513 = vunpack.c.l.b16 %v199
    %v514 = vunpack.c.l.b16 %v200
    %v515 = vunpack.c.l.b16 %v201
    %v516 = vunpack.c.l.b16 %v202
    %v517 = vunpack.c.l.b16 %v203
    %v518 = vunpack.c.l.b16 %v204
    %v519 = vunpack.c.l.b16 %v205
    %v520 = vunpack.c.l.b16 %v206
    %v521 = vunpack.c.l.b16 %v207
    %v522 = vunpack.c.l.b16 %v208
    %v523 = vunpack.c.l.b16 %v209
    %v524 = vunpack.c.l.b16 %v210
    %v525 = vunpack.c.l.b16 %v211
    %v526 = vunpack.c.l.b16 %v212
    %v527 = vunpack.c.l.b16 %v213
    %v528 = vunpack.c.l.b16 %v214
    %v529 = vunpack.c.l.b16 %v215
    %v530 = vunpack.c.l.b16 %v216
    %v531 = vunpack.c.l.b16 %v217
    %v532 = vunpack.c.l.b16 %v218
    %v533 = vunpack.c.l.b16 %v219
    %v534 = vunpack.c.l.b16 %v220
    %v535 = vunpack.c.l.b16 %v221
    %v536 = vunpack.c.l.b16 %v222
    %v537 = vunpack.c.l.b16 %v223
    %v538 = vunpack.c.l.b16 %v224
    %v539 = vunpack.c.l.b16 %v225
    %v540 = vunpack.c.l.b16 %v226
    %v541 = vunpack.c.l.b16 %v227
    %v542 = vunpack.c.l.b16 %v228
    %v543 = vunpack.c.l.b16 %v229
    %v544 = vunpack.c.l.b16 %v230
    %v545 = vunpack.c.l.b16 %v231
    %v546 = vunpack.c.l.b16 %v232
    %v547 = vunpack.c.l.b16 %v233
    %v548 = vunpack.c.l.b16 %v234
    %v549 = vunpack.c.l.b16 %v235
    %v550 = vunpack.c.l.b16 %v236
    %v551 = vunpack.c.l.b16 %v237
    %v552 = vunpack.c.l.b16 %v238
    %v553 = vunpack.c.l.b16 %v239
    %v554 = vunpack.c.l.b16 %v240
    %v555 = vunpack.c.l.b16 %v241
    %v556 = vunpack.c.l.b16 %v242
    %v557 = vunpack.c.l.b16 %v243
    %v558 = vunpack.c.l.b16 %v244
    %v559 = vunpack.c.l.b16 %v245
    %v560 = vunpack.c.l.b16 %v246
    %v561 = vunpack.c.l.b16 %v247
    %v562 = vunpack.c.l.b16 %v248
    %v563 = vunpack.c.l.b16 %v249
    %v564 = vunpack.c.l.b16 %v250
    %v565 = vunpack.c.l.b16 %v251
    %v566 = vunpack.c.l.b16 %v252
    %v567 = vunpack.c.l.b16 %v253
    %v568 = vunpack.c.l.b16 %v254
    %v569 = vunpack.c.l.b16 %v255
    %v570 = vunpack.c.l.b16 %v256
    %v571 = vunpack.c.l.b16 %v257
    %v572 = vunpack.c.l.b16 %v258
    %v573 = vunpack.c.l.b16 %v259
    %v574 = vunpack.c.l.b16 %v260
    %v575 = vunpack.c.l.b16 %v261
    %v576 = vunpack.c.l.b16 %v262
    %v577 = vunpack.c.l.b16 %v263
    %v578 = vunpack.c.l.b16 %v264
    %v579 = vunpack.c.l.b16 %v265
    %v580 = vunpack.c.l.b16 %v266
    %v581 = vunpack.c.l.b16 %v267
    %v582 = vunpack.c.l.b16 %v268
    %v583 = vunpack.c.l.b16 %v269
    %v584 = vunpack.c.l.b16 %v270
    %v585 = vunpack.c.l.b16 %v271
    %v586 = vunpack.c.l.b16 %v272
    %v587 = vunpack.c.l.b16 %v273
    %v588 = vunpack.c.l.b16 %v274
    %v589 = vunpack.c.l.b16 %v275
    %v590 = vunpack.c.l.b16 %v276
    %v591 = vunpack.c.l.b16 %v277
    %v592 = vunpack.c.l.b16 %v278
    %v593 = vpack.c.b16 %v466, %v465
    %v594 = vpack.c.b16 %v468, %v467
    %v595 = vpack.c.b16 %v470, %v469
    %v596 = vpack.c.b16 %v472, %v471
    %v597 = vpack.c.b16 %v474, %v473
    %v598 = vpack.c.b16 %v476, %v475
    %v599 = vpack.c.b16 %v478, %v477
    %v600 = vpack.c.b16 %v480, %v479
    %v601 = vpack.c.b16 %v482, %v481
    %v602 = vpack.c.b16 %v484, %v483
    %v603 = vpack.c.b16 %v486, %v485
    %v604 = vpack.c.b16 %v488, %v487
    %v605 = vpack.c.b16 %v490, %v489
    %v606 = vpack.c.b16 %v492, %v491
    %v607 = vpack.c.b16 %v494, %v493
    %v608 = vpack.c.b16 %v496, %v495
    %v609 = vpack.c.b16 %v498, %v497
    %v610 = vpack.c.b16 %v500, %v499
    %v611 = vpack.c.b16 %v502, %v501
    %v612 = vpack.c.b16 %v504, %v503
    %v613 = vpack.c.b16 %v506, %v505
    %v614 = vpack.c.b16 %v508, %v507
    %v615 = vpack.c.b16 %v510, %v509
    %v616 = vpack.c.b16 %v512, %v511
    %v617 = vpack.c.b16 %v514, %v513
    %v618 = vpack.c.b16 %v516, %v515
    %v619 = vpack.c.b16 %v518, %v517
    %v620 = vpack.c.b16 %v520, %v519
    %v621 = vpack.c.b16 %v522, %v521
    %v622 = vpack.c.b16 %v524, %v523
    %v623 = vpack.c.b16 %v526, %v525
    %v624 = vpack.c.b16 %v528, %v527
    %v625 = vpack.c.b16 %v530, %v529
    %v626 = vpack.c.b16 %v532, %v531
    %v627 = vpack.c.b16 %v534, %v533
    %v628 = vpack.c.b16 %v536, %v535
    %v629 = vpack.c.b16 %v538, %v537
    %v630 = vpack.c.b16 %v540, %v539
    %v631 = vpack.c.b16 %v542, %v541
    %v632 = vpack.c.b16 %v544, %v543
    %v633 = vpack.c.b16 %v546, %v545
    %v634 = vpack.c.b16 %v548, %v547
    %v635 = vpack.c.b16 %v550, %v549
    %v636 = vpack.c.b16 %v552, %v551
    %v637 = vpack.c.b16 %v554, %v553
    %v638 = vpack.c.b16 %v556, %v555
    %v639 = vpack.c.b16 %v558, %v557
    %v640 = vpack.c.b16 %v560, %v559
    %v641 = vpack.c.b16 %v562, %v561
    %v642 = vpack.c.b16 %v564, %v563
    %v643 = vpack.c.b16 %v566, %v565
    %v644 = vpack.c.b16 %v568, %v567
    %v645 = vpack.c.b16 %v570, %v569
    %v646 = vpack.c.b16 %v572, %v571
    %v647 = vpack.c.b16 %v574, %v573
    %v648 = vpack.c.b16 %v576, %v575
    %v649 = vpack.c.b16 %v578, %v577
    %v650 = vpack.c.b16 %v580, %v579
    %v651 = vpack.c.b16 %v582, %v581
    %v652 = vpack.c.b16 %v584, %v583
    %v653 = vpack.c.b16 %v586, %v585
    %v654 = vpack.c.b16 %v588, %v587
    %v655 = vpack.c.b16 %v590, %v589
    %v656 = vpack.c.b16 %v592, %v591
    %721 = vmatprep.subr.bf16.mxu0 0
    %722 = vmatpush1.bf16.msra.mxu0 %v593
    %723 = vmatprep.subr.bf16.mxu0 0
    %724 = vmatpush1.bf16.msra.mxu0 %v594
    %725 = vmatprep.subr.bf16.mxu0 0
    %726 = vmatpush1.bf16.msra.mxu0 %v595
    %727 = vmatprep.subr.bf16.mxu0 0
    %728 = vmatpush1.bf16.msra.mxu0 %v596
    %729 = vmatprep.subr.bf16.mxu0 0
    %730 = vmatpush1.bf16.msra.mxu0 %v597
    %731 = vmatprep.subr.bf16.mxu0 0
    %732 = vmatpush1.bf16.msra.mxu0 %v598
    %733 = vmatprep.subr.bf16.mxu0 0
    %734 = vmatpush1.bf16.msra.mxu0 %v599
    %735 = vmatprep.subr.bf16.mxu0 0
    %736 = vmatpush1.bf16.msra.mxu0 %v600
    %737 = vmatprep.subr.bf16.mxu0 0
    %738 = vmatpush1.bf16.msra.mxu0 %v601
    %739 = vmatprep.subr.bf16.mxu0 0
    %740 = vmatpush1.bf16.msra.mxu0 %v602
    %741 = vmatprep.subr.bf16.mxu0 0
    %742 = vmatpush1.bf16.msra.mxu0 %v603
    %743 = vmatprep.subr.bf16.mxu0 0
    %744 = vmatpush1.bf16.msra.mxu0 %v604
    %745 = vmatprep.subr.bf16.mxu0 0
    %746 = vmatpush1.bf16.msra.mxu0 %v605
    %747 = vmatprep.subr.bf16.mxu0 0
    %748 = vmatpush1.bf16.msra.mxu0 %v606
    %749 = vmatprep.subr.bf16.mxu0 0
    %750 = vmatpush1.bf16.msra.mxu0 %v607
    %751 = vmatprep.subr.bf16.mxu0 0
    %752 = vmatpush1.bf16.msra.mxu0 %v608
    %753 = vmatprep.mubr.bf16.mxu0 %v317
    %754 = vmatmul.mubr.bf16.gmra.mrb[0].mxu0 %v303
    %v755 = vpop.f32.mrb[0].mxu0
    %v756 = vadd.f32 0.0, %v755
    %v757 = vpop.f32.mrb[0].mxu0
    %v758 = vpop.f32.mrb[0].mxu0
    %v759 = vpop.f32.mrb[0].mxu0
    %760 = vdwg.mxu0
    %761 = vmatprep.subr.bf16.mxu0 0
    %762 = vmatpush1.bf16.msra.mxu0 %v609
    %763 = vmatprep.subr.bf16.mxu0 0
    %764 = vmatpush1.bf16.msra.mxu0 %v610
    %765 = vmatprep.subr.bf16.mxu0 0
    %766 = vmatpush1.bf16.msra.mxu0 %v611
    %767 = vmatprep.subr.bf16.mxu0 0
    %768 = vmatpush1.bf16.msra.mxu0 %v612
    %769 = vmatprep.subr.bf16.mxu0 0
    %770 = vmatpush1.bf16.msra.mxu0 %v613
    %771 = vmatprep.subr.bf16.mxu0 0
    %772 = vmatpush1.bf16.msra.mxu0 %v614
    %773 = vmatprep.subr.bf16.mxu0 0
    %774 = vmatpush1.bf16.msra.mxu0 %v615
    %775 = vmatprep.subr.bf16.mxu0 0
    %776 = vmatpush1.bf16.msra.mxu0 %v616
    %777 = vmatprep.subr.bf16.mxu0 0
    %778 = vmatpush1.bf16.msra.mxu0 %v617
    %779 = vmatprep.subr.bf16.mxu0 0
    %780 = vmatpush1.bf16.msra.mxu0 %v618
    %781 = vmatprep.subr.bf16.mxu0 0
    %782 = vmatpush1.bf16.msra.mxu0 %v619
    %783 = vmatprep.subr.bf16.mxu0 0
    %784 = vmatpush1.bf16.msra.mxu0 %v620
    %785 = vmatprep.subr.bf16.mxu0 0
    %786 = vmatpush1.bf16.msra.mxu0 %v621
    %787 = vmatprep.subr.bf16.mxu0 0
    %788 = vmatpush1.bf16.msra.mxu0 %v622
    %789 = vmatprep.subr.bf16.mxu0 0
    %790 = vmatpush1.bf16.msra.mxu0 %v623
    %791 = vmatprep.subr.bf16.mxu0 0
    %792 = vmatpush1.bf16.msra.mxu0 %v624
    %793 = vmatprep.mubr.bf16.mxu0 %v327
    %794 = vmatmul.mubr.bf16.gmra.mrb[0].mxu0 %v325
    %v795 = vpop.f32.mrb[0].mxu0
    %v796 = vadd.f32 %v756, %v795
    %v797 = vpop.f32.mrb[0].mxu0
    %v798 = vpop.f32.mrb[0].mxu0
    %v799 = vpop.f32.mrb[0].mxu0
    %800 = vdwg.mxu0
    %801 = vmatprep.subr.bf16.mxu0 0
    %802 = vmatpush1.bf16.msra.mxu0 %v625
    %803 = vmatprep.subr.bf16.mxu0 0
    %804 = vmatpush1.bf16.msra.mxu0 %v626
    %805 = vmatprep.subr.bf16.mxu0 0
    %806 = vmatpush1.bf16.msra.mxu0 %v627
    %807 = vmatprep.subr.bf16.mxu0 0
    %808 = vmatpush1.bf16.msra.mxu0 %v628
    %809 = vmatprep.subr.bf16.mxu0 0
    %810 = vmatpush1.bf16.msra.mxu0 %v629
    %811 = vmatprep.subr.bf16.mxu0 0
    %812 = vmatpush1.bf16.msra.mxu0 %v630
    %813 = vmatprep.subr.bf16.mxu0 0
    %814 = vmatpush1.bf16.msra.mxu0 %v631
    %815 = vmatprep.subr.bf16.mxu0 0
    %816 = vmatpush1.bf16.msra.mxu0 %v632
    %817 = vmatprep.subr.bf16.mxu0 0
    %818 = vmatpush1.bf16.msra.mxu0 %v633
    %819 = vmatprep.subr.bf16.mxu0 0
    %820 = vmatpush1.bf16.msra.mxu0 %v634
    %821 = vmatprep.subr.bf16.mxu0 0
    %822 = vmatpush1.bf16.msra.mxu0 %v635
    %823 = vmatprep.subr.bf16.mxu0 0
    %824 = vmatpush1.bf16.msra.mxu0 %v636
    %825 = vmatprep.subr.bf16.mxu0 0
    %826 = vmatpush1.bf16.msra.mxu0 %v637
    %827 = vmatprep.subr.bf16.mxu0 0
    %828 = vmatpush1.bf16.msra.mxu0 %v638
    %829 = vmatprep.subr.bf16.mxu0 0
    %830 = vmatpush1.bf16.msra.mxu0 %v639
    %831 = vmatprep.subr.bf16.mxu0 0
    %832 = vmatpush1.bf16.msra.mxu0 %v640
    %833 = vmatprep.mubr.bf16.mxu0 %v324
    %834 = vmatmul.mubr.bf16.gmra.mrb[0].mxu0 %v310
    %v835 = vpop.f32.mrb[0].mxu0
    %v836 = vadd.f32 %v796, %v835
    %v837 = vpop.f32.mrb[0].mxu0
    %v838 = vpop.f32.mrb[0].mxu0
    %v839 = vpop.f32.mrb[0].mxu0
    %840 = vdwg.mxu0
    %841 = vmatprep.subr.bf16.mxu0 0
    %842 = vmatpush1.bf16.msra.mxu0 %v641
    %843 = vmatprep.subr.bf16.mxu0 0
    %844 = vmatpush1.bf16.msra.mxu0 %v642
    %845 = vmatprep.subr.bf16.mxu0 0
    %846 = vmatpush1.bf16.msra.mxu0 %v643
    %847 = vmatprep.subr.bf16.mxu0 0
    %848 = vmatpush1.bf16.msra.mxu0 %v644
    %849 = vmatprep.subr.bf16.mxu0 0
    %850 = vmatpush1.bf16.msra.mxu0 %v645
    %851 = vmatprep.subr.bf16.mxu0 0
    %852 = vmatpush1.bf16.msra.mxu0 %v646
    %853 = vmatprep.subr.bf16.mxu0 0
    %854 = vmatpush1.bf16.msra.mxu0 %v647
    %855 = vmatprep.subr.bf16.mxu0 0
    %856 = vmatpush1.bf16.msra.mxu0 %v648
    %857 = vmatprep.subr.bf16.mxu0 0
    %858 = vmatpush1.bf16.msra.mxu0 %v649
    %859 = vmatprep.subr.bf16.mxu0 0
    %860 = vmatpush1.bf16.msra.mxu0 %v650
    %861 = vmatprep.subr.bf16.mxu0 0
    %862 = vmatpush1.bf16.msra.mxu0 %v651
    %863 = vmatprep.subr.bf16.mxu0 0
    %864 = vmatpush1.bf16.msra.mxu0 %v652
    %865 = vmatprep.subr.bf16.mxu0 0
    %866 = vmatpush1.bf16.msra.mxu0 %v653
    %867 = vmatprep.subr.bf16.mxu0 0
    %868 = vmatpush1.bf16.msra.mxu0 %v654
    %869 = vmatprep.subr.bf16.mxu0 0
    %870 = vmatpush1.bf16.msra.mxu0 %v655
    %871 = vmatprep.subr.bf16.mxu0 0
    %872 = vmatpush1.bf16.msra.mxu0 %v656
    %873 = vmatprep.mubr.bf16.mxu0 %v328
    %874 = vmatmul.mubr.bf16.gmra.mrb[0].mxu0 %v326
    %v875 = vpop.f32.mrb[0].mxu0
    %v876 = vadd.f32 %v836, %v875
    %v877 = vpop.f32.mrb[0].mxu0
    %v878 = vpop.f32.mrb[0].mxu0
    %v879 = vpop.f32.mrb[0].mxu0
    %880 = vdwg.mxu0
    %v1009 = vunpack.c.l.b16 %v23
    %v1010 = vunpack.c.l.b16 %v24
    %v1011 = vunpack.c.l.b16 %v25
    %v1012 = vunpack.c.l.b16 %v26
    %v1013 = vunpack.c.l.b16 %v27
    %v1014 = vunpack.c.l.b16 %v28
    %v1015 = vunpack.c.l.b16 %v29
    %v1016 = vunpack.c.l.b16 %v30
    %v1017 = vunpack.c.l.b16 %v31
    %v1018 = vunpack.c.l.b16 %v32
    %v1019 = vunpack.c.l.b16 %v33
    %v1020 = vunpack.c.l.b16 %v34
    %v1021 = vunpack.c.l.b16 %v35
    %v1022 = vunpack.c.l.b16 %v36
    %v1023 = vunpack.c.l.b16 %v37
    %v1024 = vunpack.c.l.b16 %v38
    %v1025 = vunpack.c.l.b16 %v39
    %v1026 = vunpack.c.l.b16 %v40
    %v1027 = vunpack.c.l.b16 %v41
    %v1028 = vunpack.c.l.b16 %v42
    %v1029 = vunpack.c.l.b16 %v43
    %v1030 = vunpack.c.l.b16 %v44
    %v1031 = vunpack.c.l.b16 %v45
    %v1032 = vunpack.c.l.b16 %v46
    %v1033 = vunpack.c.l.b16 %v47
    %v1034 = vunpack.c.l.b16 %v48
    %v1035 = vunpack.c.l.b16 %v49
    %v1036 = vunpack.c.l.b16 %v50
    %v1037 = vunpack.c.l.b16 %v51
    %v1038 = vunpack.c.l.b16 %v52
    %v1039 = vunpack.c.l.b16 %v53
    %v1040 = vunpack.c.l.b16 %v54
    %v1041 = vunpack.c.l.b16 %v55
    %v1042 = vunpack.c.l.b16 %v56
    %v1043 = vunpack.c.l.b16 %v57
    %v1044 = vunpack.c.l.b16 %v58
    %v1045 = vunpack.c.l.b16 %v59
    %v1046 = vunpack.c.l.b16 %v60
    %v1047 = vunpack.c.l.b16 %v61
    %v1048 = vunpack.c.l.b16 %v62
    %v1049 = vunpack.c.l.b16 %v63
    %v1050 = vunpack.c.l.b16 %v64
    %v1051 = vunpack.c.l.b16 %v65
    %v1052 = vunpack.c.l.b16 %v66
    %v1053 = vunpack.c.l.b16 %v67
    %v1054 = vunpack.c.l.b16 %v68
    %v1055 = vunpack.c.l.b16 %v69
    %v1056 = vunpack.c.l.b16 %v70
    %v1057 = vunpack.c.l.b16 %v71
    %v1058 = vunpack.c.l.b16 %v72
    %v1059 = vunpack.c.l.b16 %v73
    %v1060 = vunpack.c.l.b16 %v74
    %v1061 = vunpack.c.l.b16 %v75
    %v1062 = vunpack.c.l.b16 %v76
    %v1063 = vunpack.c.l.b16 %v77
    %v1064 = vunpack.c.l.b16 %v78
    %v1065 = vunpack.c.l.b16 %v79
    %v1066 = vunpack.c.l.b16 %v80
    %v1067 = vunpack.c.l.b16 %v81
    %v1068 = vunpack.c.l.b16 %v82
    %v1069 = vunpack.c.l.b16 %v83
    %v1070 = vunpack.c.l.b16 %v84
    %v1071 = vunpack.c.l.b16 %v85
    %v1072 = vunpack.c.l.b16 %v86
    %v1073 = vunpack.c.l.b16 %v87
    %v1074 = vunpack.c.l.b16 %v88
    %v1075 = vunpack.c.l.b16 %v89
    %v1076 = vunpack.c.l.b16 %v90
    %v1077 = vunpack.c.l.b16 %v91
    %v1078 = vunpack.c.l.b16 %v92
    %v1079 = vunpack.c.l.b16 %v93
    %v1080 = vunpack.c.l.b16 %v94
    %v1081 = vunpack.c.l.b16 %v95
    %v1082 = vunpack.c.l.b16 %v96
    %v1083 = vunpack.c.l.b16 %v97
    %v1084 = vunpack.c.l.b16 %v98
    %v1085 = vunpack.c.l.b16 %v99
    %v1086 = vunpack.c.l.b16 %v100
    %v1087 = vunpack.c.l.b16 %v101
    %v1088 = vunpack.c.l.b16 %v102
    %v1089 = vunpack.c.l.b16 %v103
    %v1090 = vunpack.c.l.b16 %v104
    %v1091 = vunpack.c.l.b16 %v105
    %v1092 = vunpack.c.l.b16 %v106
    %v1093 = vunpack.c.l.b16 %v107
    %v1094 = vunpack.c.l.b16 %v108
    %v1095 = vunpack.c.l.b16 %v109
    %v1096 = vunpack.c.l.b16 %v110
    %v1097 = vunpack.c.l.b16 %v111
    %v1098 = vunpack.c.l.b16 %v112
    %v1099 = vunpack.c.l.b16 %v113
    %v1100 = vunpack.c.l.b16 %v114
    %v1101 = vunpack.c.l.b16 %v115
    %v1102 = vunpack.c.l.b16 %v116
    %v1103 = vunpack.c.l.b16 %v117
    %v1104 = vunpack.c.l.b16 %v118
    %v1105 = vunpack.c.l.b16 %v119
    %v1106 = vunpack.c.l.b16 %v120
    %v1107 = vunpack.c.l.b16 %v121
    %v1108 = vunpack.c.l.b16 %v122
    %v1109 = vunpack.c.l.b16 %v123
    %v1110 = vunpack.c.l.b16 %v124
    %v1111 = vunpack.c.l.b16 %v125
    %v1112 = vunpack.c.l.b16 %v126
    %v1113 = vunpack.c.l.b16 %v127
    %v1114 = vunpack.c.l.b16 %v128
    %v1115 = vunpack.c.l.b16 %v129
    %v1116 = vunpack.c.l.b16 %v130
    %v1117 = vunpack.c.l.b16 %v131
    %v1118 = vunpack.c.l.b16 %v132
    %v1119 = vunpack.c.l.b16 %v133
    %v1120 = vunpack.c.l.b16 %v134
    %v1121 = vunpack.c.l.b16 %v135
    %v1122 = vunpack.c.l.b16 %v136
    %v1123 = vunpack.c.l.b16 %v137
    %v1124 = vunpack.c.l.b16 %v138
    %v1125 = vunpack.c.l.b16 %v139
    %v1126 = vunpack.c.l.b16 %v140
    %v1127 = vunpack.c.l.b16 %v141
    %v1128 = vunpack.c.l.b16 %v142
    %v1129 = vunpack.c.l.b16 %v143
    %v1130 = vunpack.c.l.b16 %v144
    %v1131 = vunpack.c.l.b16 %v145
    %v1132 = vunpack.c.l.b16 %v146
    %v1133 = vunpack.c.l.b16 %v147
    %v1134 = vunpack.c.l.b16 %v148
    %v1135 = vunpack.c.l.b16 %v149
    %v1136 = vunpack.c.l.b16 %v150
    %v1137 = vpack.c.b16 %v1010, %v1009
    %v1138 = vpack.c.b16 %v1012, %v1011
    %v1139 = vpack.c.b16 %v1014, %v1013
    %v1140 = vpack.c.b16 %v1016, %v1015
    %v1141 = vpack.c.b16 %v1018, %v1017
    %v1142 = vpack.c.b16 %v1020, %v1019
    %v1143 = vpack.c.b16 %v1022, %v1021
    %v1144 = vpack.c.b16 %v1024, %v1023
    %v1145 = vpack.c.b16 %v1026, %v1025
    %v1146 = vpack.c.b16 %v1028, %v1027
    %v1147 = vpack.c.b16 %v1030, %v1029
    %v1148 = vpack.c.b16 %v1032, %v1031
    %v1149 = vpack.c.b16 %v1034, %v1033
    %v1150 = vpack.c.b16 %v1036, %v1035
    %v1151 = vpack.c.b16 %v1038, %v1037
    %v1152 = vpack.c.b16 %v1040, %v1039
    %v1153 = vpack.c.b16 %v1042, %v1041
    %v1154 = vpack.c.b16 %v1044, %v1043
    %v1155 = vpack.c.b16 %v1046, %v1045
    %v1156 = vpack.c.b16 %v1048, %v1047
    %v1157 = vpack.c.b16 %v1050, %v1049
    %v1158 = vpack.c.b16 %v1052, %v1051
    %v1159 = vpack.c.b16 %v1054, %v1053
    %v1160 = vpack.c.b16 %v1056, %v1055
    %v1161 = vpack.c.b16 %v1058, %v1057
    %v1162 = vpack.c.b16 %v1060, %v1059
    %v1163 = vpack.c.b16 %v1062, %v1061
    %v1164 = vpack.c.b16 %v1064, %v1063
    %v1165 = vpack.c.b16 %v1066, %v1065
    %v1166 = vpack.c.b16 %v1068, %v1067
    %v1167 = vpack.c.b16 %v1070, %v1069
    %v1168 = vpack.c.b16 %v1072, %v1071
    %v1169 = vpack.c.b16 %v1074, %v1073
    %v1170 = vpack.c.b16 %v1076, %v1075
    %v1171 = vpack.c.b16 %v1078, %v1077
    %v1172 = vpack.c.b16 %v1080, %v1079
    %v1173 = vpack.c.b16 %v1082, %v1081
    %v1174 = vpack.c.b16 %v1084, %v1083
    %v1175 = vpack.c.b16 %v1086, %v1085
    %v1176 = vpack.c.b16 %v1088, %v1087
    %v1177 = vpack.c.b16 %v1090, %v1089
    %v1178 = vpack.c.b16 %v1092, %v1091
    %v1179 = vpack.c.b16 %v1094, %v1093
    %v1180 = vpack.c.b16 %v1096, %v1095
    %v1181 = vpack.c.b16 %v1098, %v1097
    %v1182 = vpack.c.b16 %v1100, %v1099
    %v1183 = vpack.c.b16 %v1102, %v1101
    %v1184 = vpack.c.b16 %v1104, %v1103
    %v1185 = vpack.c.b16 %v1106, %v1105
    %v1186 = vpack.c.b16 %v1108, %v1107
    %v1187 = vpack.c.b16 %v1110, %v1109
    %v1188 = vpack.c.b16 %v1112, %v1111
    %v1189 = vpack.c.b16 %v1114, %v1113
    %v1190 = vpack.c.b16 %v1116, %v1115
    %v1191 = vpack.c.b16 %v1118, %v1117
    %v1192 = vpack.c.b16 %v1120, %v1119
    %v1193 = vpack.c.b16 %v1122, %v1121
    %v1194 = vpack.c.b16 %v1124, %v1123
    %v1195 = vpack.c.b16 %v1126, %v1125
    %v1196 = vpack.c.b16 %v1128, %v1127
    %v1197 = vpack.c.b16 %v1130, %v1129
    %v1198 = vpack.c.b16 %v1132, %v1131
    %v1199 = vpack.c.b16 %v1134, %v1133
    %v1200 = vpack.c.b16 %v1136, %v1135
    %1265 = vmatprep.subr.bf16.mxu0 0
    %1266 = vmatpush1.bf16.msra.mxu0 %v1137
    %1267 = vmatprep.subr.bf16.mxu0 0
    %1268 = vmatpush1.bf16.msra.mxu0 %v1138
    %1269 = vmatprep.subr.bf16.mxu0 0
    %1270 = vmatpush1.bf16.msra.mxu0 %v1139
    %1271 = vmatprep.subr.bf16.mxu0 0
    %1272 = vmatpush1.bf16.msra.mxu0 %v1140
    %1273 = vmatprep.subr.bf16.mxu0 0
    %1274 = vmatpush1.bf16.msra.mxu0 %v1141
    %1275 = vmatprep.subr.bf16.mxu0 0
    %1276 = vmatpush1.bf16.msra.mxu0 %v1142
    %1277 = vmatprep.subr.bf16.mxu0 0
    %1278 = vmatpush1.bf16.msra.mxu0 %v1143
    %1279 = vmatprep.subr.bf16.mxu0 0
    %1280 = vmatpush1.bf16.msra.mxu0 %v1144
    %1281 = vmatprep.subr.bf16.mxu0 0
    %1282 = vmatpush1.bf16.msra.mxu0 %v1145
    %1283 = vmatprep.subr.bf16.mxu0 0
    %1284 = vmatpush1.bf16.msra.mxu0 %v1146
    %1285 = vmatprep.subr.bf16.mxu0 0
    %1286 = vmatpush1.bf16.msra.mxu0 %v1147
    %1287 = vmatprep.subr.bf16.mxu0 0
    %1288 = vmatpush1.bf16.msra.mxu0 %v1148
    %1289 = vmatprep.subr.bf16.mxu0 0
    %1290 = vmatpush1.bf16.msra.mxu0 %v1149
    %1291 = vmatprep.subr.bf16.mxu0 0
    %1292 = vmatpush1.bf16.msra.mxu0 %v1150
    %1293 = vmatprep.subr.bf16.mxu0 0
    %1294 = vmatpush1.bf16.msra.mxu0 %v1151
    %1295 = vmatprep.subr.bf16.mxu0 0
    %1296 = vmatpush1.bf16.msra.mxu0 %v1152
    %1297 = vmatprep.mubr.bf16.mxu0 %v317
    %1298 = vmatmul.mubr.bf16.gmra.mrb[0].mxu0 %v303
    %v1299 = vpop.f32.mrb[0].mxu0
    %v1300 = vadd.f32 %v876, %v1299
    %v1301 = vpop.f32.mrb[0].mxu0
    %v1302 = vpop.f32.mrb[0].mxu0
    %v1303 = vpop.f32.mrb[0].mxu0
    %1304 = vdwg.mxu0
    %1305 = vmatprep.subr.bf16.mxu0 0
    %1306 = vmatpush1.bf16.msra.mxu0 %v1153
    %1307 = vmatprep.subr.bf16.mxu0 0
    %1308 = vmatpush1.bf16.msra.mxu0 %v1154
    %1309 = vmatprep.subr.bf16.mxu0 0
    %1310 = vmatpush1.bf16.msra.mxu0 %v1155
    %1311 = vmatprep.subr.bf16.mxu0 0
    %1312 = vmatpush1.bf16.msra.mxu0 %v1156
    %1313 = vmatprep.subr.bf16.mxu0 0
    %1314 = vmatpush1.bf16.msra.mxu0 %v1157
    %1315 = vmatprep.subr.bf16.mxu0 0
    %1316 = vmatpush1.bf16.msra.mxu0 %v1158
    %1317 = vmatprep.subr.bf16.mxu0 0
    %1318 = vmatpush1.bf16.msra.mxu0 %v1159
    %1319 = vmatprep.subr.bf16.mxu0 0
    %1320 = vmatpush1.bf16.msra.mxu0 %v1160
    %1321 = vmatprep.subr.bf16.mxu0 0
    %1322 = vmatpush1.bf16.msra.mxu0 %v1161
    %1323 = vmatprep.subr.bf16.mxu0 0
    %1324 = vmatpush1.bf16.msra.mxu0 %v1162
    %1325 = vmatprep.subr.bf16.mxu0 0
    %1326 = vmatpush1.bf16.msra.mxu0 %v1163
    %1327 = vmatprep.subr.bf16.mxu0 0
    %1328 = vmatpush1.bf16.msra.mxu0 %v1164
    %1329 = vmatprep.subr.bf16.mxu0 0
    %1330 = vmatpush1.bf16.msra.mxu0 %v1165
    %1331 = vmatprep.subr.bf16.mxu0 0
    %1332 = vmatpush1.bf16.msra.mxu0 %v1166
    %1333 = vmatprep.subr.bf16.mxu0 0
    %1334 = vmatpush1.bf16.msra.mxu0 %v1167
    %1335 = vmatprep.subr.bf16.mxu0 0
    %1336 = vmatpush1.bf16.msra.mxu0 %v1168
    %1337 = vmatprep.mubr.bf16.mxu0 %v327
    %1338 = vmatmul.mubr.bf16.gmra.mrb[0].mxu0 %v325
    %v1339 = vpop.f32.mrb[0].mxu0
    %v1340 = vadd.f32 %v1300, %v1339
    %v1341 = vpop.f32.mrb[0].mxu0
    %v1342 = vpop.f32.mrb[0].mxu0
    %v1343 = vpop.f32.mrb[0].mxu0
    %1344 = vdwg.mxu0
    %1345 = vmatprep.subr.bf16.mxu0 0
    %1346 = vmatpush1.bf16.msra.mxu0 %v1169
    %1347 = vmatprep.subr.bf16.mxu0 0
    %1348 = vmatpush1.bf16.msra.mxu0 %v1170
    %1349 = vmatprep.subr.bf16.mxu0 0
    %1350 = vmatpush1.bf16.msra.mxu0 %v1171
    %1351 = vmatprep.subr.bf16.mxu0 0
    %1352 = vmatpush1.bf16.msra.mxu0 %v1172
    %1353 = vmatprep.subr.bf16.mxu0 0
    %1354 = vmatpush1.bf16.msra.mxu0 %v1173
    %1355 = vmatprep.subr.bf16.mxu0 0
    %1356 = vmatpush1.bf16.msra.mxu0 %v1174
    %1357 = vmatprep.subr.bf16.mxu0 0
    %1358 = vmatpush1.bf16.msra.mxu0 %v1175
    %1359 = vmatprep.subr.bf16.mxu0 0
    %1360 = vmatpush1.bf16.msra.mxu0 %v1176
    %1361 = vmatprep.subr.bf16.mxu0 0
    %1362 = vmatpush1.bf16.msra.mxu0 %v1177
    %1363 = vmatprep.subr.bf16.mxu0 0
    %1364 = vmatpush1.bf16.msra.mxu0 %v1178
    %1365 = vmatprep.subr.bf16.mxu0 0
    %1366 = vmatpush1.bf16.msra.mxu0 %v1179
    %1367 = vmatprep.subr.bf16.mxu0 0
    %1368 = vmatpush1.bf16.msra.mxu0 %v1180
    %1369 = vmatprep.subr.bf16.mxu0 0
    %1370 = vmatpush1.bf16.msra.mxu0 %v1181
    %1371 = vmatprep.subr.bf16.mxu0 0
    %1372 = vmatpush1.bf16.msra.mxu0 %v1182
    %1373 = vmatprep.subr.bf16.mxu0 0
    %1374 = vmatpush1.bf16.msra.mxu0 %v1183
    %1375 = vmatprep.subr.bf16.mxu0 0
    %1376 = vmatpush1.bf16.msra.mxu0 %v1184
    %1377 = vmatprep.mubr.bf16.mxu0 %v324
    %1378 = vmatmul.mubr.bf16.gmra.mrb[0].mxu0 %v310
    %v1379 = vpop.f32.mrb[0].mxu0
    %v1380 = vadd.f32 %v1340, %v1379
    %v1381 = vpop.f32.mrb[0].mxu0
    %v1382 = vpop.f32.mrb[0].mxu0
    %v1383 = vpop.f32.mrb[0].mxu0
    %1384 = vdwg.mxu0
    %1385 = vmatprep.subr.bf16.mxu0 0
    %1386 = vmatpush1.bf16.msra.mxu0 %v1185
    %1387 = vmatprep.subr.bf16.mxu0 0
    %1388 = vmatpush1.bf16.msra.mxu0 %v1186
    %1389 = vmatprep.subr.bf16.mxu0 0
    %1390 = vmatpush1.bf16.msra.mxu0 %v1187
    %1391 = vmatprep.subr.bf16.mxu0 0
    %1392 = vmatpush1.bf16.msra.mxu0 %v1188
    %1393 = vmatprep.subr.bf16.mxu0 0
    %1394 = vmatpush1.bf16.msra.mxu0 %v1189
    %1395 = vmatprep.subr.bf16.mxu0 0
    %1396 = vmatpush1.bf16.msra.mxu0 %v1190
    %1397 = vmatprep.subr.bf16.mxu0 0
    %1398 = vmatpush1.bf16.msra.mxu0 %v1191
    %1399 = vmatprep.subr.bf16.mxu0 0
    %1400 = vmatpush1.bf16.msra.mxu0 %v1192
    %1401 = vmatprep.subr.bf16.mxu0 0
    %1402 = vmatpush1.bf16.msra.mxu0 %v1193
    %1403 = vmatprep.subr.bf16.mxu0 0
    %1404 = vmatpush1.bf16.msra.mxu0 %v1194
    %1405 = vmatprep.subr.bf16.mxu0 0
    %1406 = vmatpush1.bf16.msra.mxu0 %v1195
    %1407 = vmatprep.subr.bf16.mxu0 0
    %1408 = vmatpush1.bf16.msra.mxu0 %v1196
    %1409 = vmatprep.subr.bf16.mxu0 0
    %1410 = vmatpush1.bf16.msra.mxu0 %v1197
    %1411 = vmatprep.subr.bf16.mxu0 0
    %1412 = vmatpush1.bf16.msra.mxu0 %v1198
    %1413 = vmatprep.subr.bf16.mxu0 0
    %1414 = vmatpush1.bf16.msra.mxu0 %v1199
    %1415 = vmatprep.subr.bf16.mxu0 0
    %1416 = vmatpush1.bf16.msra.mxu0 %v1200
    %1417 = vmatprep.mubr.bf16.mxu0 %v328
    %1418 = vmatmul.mubr.bf16.gmra.mrb[0].mxu0 %v326
    %v1419 = vpop.f32.mrb[0].mxu0
    %v1420 = vadd.f32 %v1380, %v1419
    %v1421 = vpop.f32.mrb[0].mxu0
    %v1422 = vpop.f32.mrb[0].mxu0
    %v1423 = vpop.f32.mrb[0].mxu0
    %1424 = vdwg.mxu0
    %v1425 = vld [vmem:[%s2] sm:$0x1]
    %v1427 = vlaneseq
    %v1428 = vshrl.u32 %v1427, 7
    %v1429 = vsub.s32 0, %v1428
    %v1430 = vrot.slane %v1425, %v1429
    %v1432 = vadd.f32 %v1420, %v1430
    %v1433 = vld [vmem:[%s4] sm:$0x1]
    %v1435 = vlaneseq
    %v1436 = vshrl.u32 %v1435, 7
    %v1437 = vsub.s32 0, %v1436
    %v1438 = vrot.slane %v1433, %v1437
    %v1440 = vadd.f32 %v1432, %v1438
    %v1441 = vmul.f32 %v1440, 0.5
    %vm1442 = vcmask 74752
    %1443 = vst.msk [vmem:[#allocation2] sm:$0x3] %vm1442, %v1441
    // Predicated region
    $region22: #{tpu_custom_call.1} parent=1 // pred_check
      _
    $region23: #{tpu_custom_call.1} parent=1 // pred_check_branch
      %1445 = sbr.rel (0) target = $region25
    $region24: #{tpu_custom_call.1} parent=1 // pred_region
      %s1447 = ssub.s32 32, 32
      %1448 = vsyncadd [#allocation3], %s1447
      %s1450 = sshll.u32 [#allocation2], 4
      %s1451 = int_to_ptr.vmem [resolvable:$true] %s1450
      %1453 = dma.vmem_to_hbm [thread:$0]  %s1451, 32, %s5, [#allocation3]
    $region25: #{tpu_custom_call.1} parent=1 // pred_fallthru
      _
    // Predicated region
    $region26: #{tpu_custom_call.1} parent=1 // pred_check
      _
    $region27: #{tpu_custom_call.1} parent=1 // pred_check_branch
      %1455 = sbr.rel (0) target = $region29
    $region28: #{tpu_custom_call.1} parent=1 // pred_region
      %1456 = dma.done [#allocation3], 32
    $region29: #{tpu_custom_call.1} parent=1 // pred_fallthru
      _
    %1457 = vsyncpa [#allocation3], 1

</llo_original>
